<compile_context>
chip_gen: v7x
topology: tpu7x:2x2x1
jax: 0.10.0
libtpu: 0.0.40
codegen_flags: <defaults>
</compile_context>

<pallas_src>
import math

import jax
import jax.numpy as jnp
import numpy as np
from jax.experimental import pallas as pl

LANE = 128  # TPU lane width; all packed buffers are 128-lane dense


def _rup8(n):
    return ((n + 7) // 8) * 8


def _layout(input_size, hidden_size, output_size, mem_dim, read_heads):
    """Static row / lane offsets of the single packed weight slab."""
    I, H, O, W, R = input_size, hidden_size, output_size, mem_dim, read_heads
    assert I <= LANE and H <= LANE

    # Interface lane layout (big fields first, 16-aligned; scalars at the end).
    cols = {}
    cols["ctrl"] = 0                      # output head  (O)   -> coincides with output cols 0:O
    cols["wk"] = O                        # write key    (W)
    cols["er"] = O + W                    # erase vector (W)
    cols["wv"] = O + 2 * W                # write vector (W)
    cols["rk"] = O + 3 * W                # read keys    (R*W)
    cols["wb"] = cols["rk"] + R * W       # write beta   (1)
    cols["wg"] = cols["wb"] + 1           # write gate   (1)
    cols["rb"] = cols["wg"] + 1           # read betas   (R)
    assert cols["rb"] + R <= LANE, "interface fields must fit in 128 lanes"
    assert O + R * W <= LANE, "dense output fields must fit in 128 lanes"

    # Slab row layout (all offsets are multiples of 8 -> sublane-aligned views).
    rows = {}
    rows["wx"] = 0
    rows["wh"] = _rup8(I)
    rows["wif"] = rows["wh"] + _rup8(H)
    rows["wor"] = rows["wif"] + LANE
    rows["bh"] = rows["wor"] + _rup8(R * W)
    rows["bo"] = rows["bh"] + 8
    rows["rows"] = rows["bo"] + 8
    return rows, cols


# -----------------------------------------------------------------------------
# Kernel
# -----------------------------------------------------------------------------
def _make_dnc_kernel(I, H, O, W, R):
    rows, cols = _layout(I, H, O, W, R)
    R_WX, R_WH, R_WIF = rows["wx"], rows["wh"], rows["wif"]
    R_WOR, R_BH, R_BO = rows["wor"], rows["bh"], rows["bo"]
    C_WK, C_ER, C_WV = cols["wk"], cols["er"], cols["wv"]
    C_RK, C_WB, C_WG, C_RB = cols["rk"], cols["wb"], cols["wg"], cols["rb"]

    def kernel(x_ref, s_ref, mem_ref, link_ref, slab_ref,
               mem_out_ref, link_out_ref, dense_out_ref):
        f32 = jnp.float32
        eps = 1e-6

        X = x_ref[...]                    # [B, I]
        S = s_ref[...]                    # [B, H]
        M = mem_ref[...]                  # [B, N, W]
        L = link_ref[...]                 # [B, N, N]
        N = M.shape[1]

        # ---- controller: split dot (no lane concat), 128-lane dense -----------
        h_pre = (jnp.dot(X, slab_ref[R_WX:R_WX + I, :], preferred_element_type=f32)
                 + jnp.dot(S, slab_ref[R_WH:R_WH + H, :], preferred_element_type=f32)
                 + slab_ref[R_BH:R_BH + 1, :])
        h = jnp.tanh(h_pre)               # [B, 128]; cols >= H are tanh(0) = 0

        # ---- single fused 128x128 interface projection (one MXU tile) ---------
        iface = jnp.dot(h, slab_ref[R_WIF:R_WIF + LANE, :],
                        preferred_element_type=f32)                       # [B, 128]

        write_key = iface[:, C_WK:C_WK + W]                                # [B, W]
        erase = jax.nn.sigmoid(iface[:, C_ER:C_ER + W])                    # [B, W]
        write_vec = iface[:, C_WV:C_WV + W]                                # [B, W]
        write_beta = 1.0 + jax.nn.softplus(iface[:, C_WB:C_WB + 1])        # [B, 1]
        write_gate = jax.nn.sigmoid(iface[:, C_WG:C_WG + 1])               # [B, 1]
        read_beta = 1.0 + jax.nn.softplus(iface[:, C_RB:C_RB + R])         # [B, R]

        # ---- content-based write addressing (exact cosine + exact softmax) ----
        norm_m = jnp.sqrt(jnp.sum(M * M, axis=-1))                         # [B, N]
        norm_kw = jnp.sqrt(jnp.sum(write_key * write_key, axis=-1,
                                   keepdims=True))                         # [B, 1]
        dot_w = jnp.sum(M * write_key[:, None, :], axis=-1)                # [B, N]
        sim_w = dot_w / (norm_m * norm_kw + eps)
        lg_w = write_beta * sim_w
        lg_w = lg_w - jnp.max(lg_w, axis=-1, keepdims=True)
        e_w = jnp.exp(lg_w)
        ww = write_gate * (e_w / jnp.sum(e_w, axis=-1, keepdims=True))     # [B, N]

        # ---- memory erase + write ---------------------------------------------
        wwc = ww[:, :, None]                                               # [B, N, 1]
        M_new = (M * (1.0 - wwc * erase[:, None, :])
                 + wwc * write_vec[:, None, :])                            # [B, N, W]
        mem_out_ref[...] = M_new

        # ---- temporal link-matrix update (precedence approximated by ww) ------
        ri = jax.lax.broadcasted_iota(jnp.int32, (N, N), 0)
        ci = jax.lax.broadcasted_iota(jnp.int32, (N, N), 1)
        off_diag = (ri != ci).astype(f32)                                  # [N, N]
        wi = ww[:, :, None]
        wj = ww[:, None, :]
        link_out_ref[...] = ((1.0 - wi - wj) * L + wi * wj) * off_diag[None, :, :]

        # ---- read heads: VPU/XLU only, no reshapes, no lane concats -----------
        lane_idx = jax.lax.broadcasted_iota(jnp.int32, (1, LANE), 1)
        ctrl_mask = (lane_idx < O).astype(f32)                             # [1, 128]
        # output head (iface cols 0:O) + output bias, already in output lane layout
        acc = iface * ctrl_mask + slab_ref[R_BO:R_BO + 1, :]               # [B, 128]

        norm_m2 = jnp.sqrt(jnp.sum(M_new * M_new, axis=-1))                # [B, N]
        for r in range(R):  # static unroll, R is tiny
            k_r = iface[:, C_RK + r * W:C_RK + (r + 1) * W]                # [B, W]
            norm_kr = jnp.sqrt(jnp.sum(k_r * k_r, axis=-1, keepdims=True)) # [B, 1]
            dot_r = jnp.sum(M_new * k_r[:, None, :], axis=-1)              # [B, N]
            sim_r = dot_r / (norm_m2 * norm_kr + eps)
            lg_r = read_beta[:, r:r + 1] * sim_r
            lg_r = lg_r - jnp.max(lg_r, axis=-1, keepdims=True)
            e_r = jnp.exp(lg_r)
            w_r = e_r / jnp.sum(e_r, axis=-1, keepdims=True)               # [B, N]
            read_r = jnp.sum(w_r[:, :, None] * M_new, axis=1)              # [B, W]
            # extended read->output block: cols 0:O add w_or[r], identity cols
            # O + r*W : O + (r+1)*W scatter read_r into the output slab.
            w_or_r = slab_ref[R_WOR + r * W:R_WOR + (r + 1) * W, :]        # [W, 128]
            acc = acc + jnp.sum(read_r[:, :, None] * w_or_r[None, :, :], axis=1)

        # one lane-dense store: [controls(O) | read_0(W) | ... | read_{R-1}(W) | 0 pad]
        dense_out_ref[...] = acc

    return kernel


# -----------------------------------------------------------------------------
# Wrapper
# -----------------------------------------------------------------------------
def make_memory_network_forward(output_size, read_heads):
    O, R = output_size, read_heads

    def _forward(x, prev_state, memory, link_matrix, slab):
        B, I = x.shape
        H = prev_state.shape[1]
        _, N, W = memory.shape

        kernel = _make_dnc_kernel(I, H, O, W, R)
        out_shape = (
            jax.ShapeDtypeStruct((B, N, W), jnp.float32),     # memory
            jax.ShapeDtypeStruct((B, N, N), jnp.float32),     # link matrix
            jax.ShapeDtypeStruct((B, LANE), jnp.float32),     # [controls | reads | pad]
        )
        # no grid: single invocation, whole (tiny) arrays live in VMEM;
        # memory / link_matrix alias their outputs.
        mem_new, link_new, dense = pl.pallas_call(
            kernel,
            out_shape=out_shape,
            input_output_aliases={2: 0, 3: 1},
        )(x, prev_state, memory, link_matrix, slab)

        controls = dense[:, :O]
        read_vec = dense[:, O:O + R * W].reshape(B, R, W)
        return mem_new, link_new, controls, read_vec

    return jax.jit(_forward)


# -----------------------------------------------------------------------------
# Parameter init + one-time packing into a single lane-dense slab
# -----------------------------------------------------------------------------
def init_params(key, input_size, hidden_size, output_size, mem_size, mem_dim, read_heads):
    del mem_size  # slot count does not appear in learned parameter shapes here
    ks = jax.random.split(key, 16)

    def dense(k, shape, fan_in):
        return (jax.random.normal(k, shape, jnp.float32) / math.sqrt(fan_in)).astype(jnp.float32)

    H, I, O, W, R = hidden_size, input_size, output_size, mem_dim, read_heads
    return {
        "w_ih": dense(ks[0], (I, H), I),
        "w_hh": dense(ks[1], (H, H), H),
        "b_h": jnp.zeros((1, H), jnp.float32),
        "w_rk": dense(ks[2], (H, R, W), H),
        "w_rb": dense(ks[3], (H, R), H),
        "w_wk": dense(ks[4], (H, W), H),
        "w_wb": dense(ks[5], (H, 1), H),
        "w_er": dense(ks[6], (H, W), H),
        "w_wv": dense(ks[7], (H, W), H),
        "w_wg": dense(ks[8], (H, 1), H),
        "w_oh": dense(ks[9], (H, O), H),
        "w_or": dense(ks[10], (R, W, O), R * W),
        "b_o": jnp.zeros((1, O), jnp.float32),
    }


def pack_params(params):
    """Pack all learned tensors into ONE [rows, 128] lane-dense f32 slab (done once)."""
    w_ih = np.asarray(params["w_ih"])
    w_hh = np.asarray(params["w_hh"])
    b_h = np.asarray(params["b_h"])
    w_rk = np.asarray(params["w_rk"])
    w_rb = np.asarray(params["w_rb"])
    w_wk = np.asarray(params["w_wk"])
    w_wb = np.asarray(params["w_wb"])
    w_er = np.asarray(params["w_er"])
    w_wv = np.asarray(params["w_wv"])
    w_wg = np.asarray(params["w_wg"])
    w_oh = np.asarray(params["w_oh"])
    w_or = np.asarray(params["w_or"])
    b_o = np.asarray(params["b_o"])

    I, H = w_ih.shape
    W = w_wk.shape[1]
    R = w_rk.shape[1]
    O = w_oh.shape[1]
    rows, cols = _layout(I, H, O, W, R)

    slab = np.zeros((rows["rows"], LANE), np.float32)

    # controller weights / bias, padded to 128 output lanes (pad cols stay 0 -> tanh(0)=0)
    slab[rows["wx"]:rows["wx"] + I, :H] = w_ih
    slab[rows["wh"]:rows["wh"] + H, :H] = w_hh
    slab[rows["bh"], :H] = b_h[0]

    # fused 128x128 interface projection (rows >= H stay zero)
    blk = slab[rows["wif"]:rows["wif"] + LANE]
    blk[:H, cols["ctrl"]:cols["ctrl"] + O] = w_oh
    blk[:H, cols["wk"]:cols["wk"] + W] = w_wk
    blk[:H, cols["er"]:cols["er"] + W] = w_er
    blk[:H, cols["wv"]:cols["wv"] + W] = w_wv
    blk[:H, cols["rk"]:cols["rk"] + R * W] = w_rk.reshape(H, R * W)
    blk[:H, cols["wb"]] = w_wb[:, 0]
    blk[:H, cols["wg"]] = w_wg[:, 0]
    blk[:H, cols["rb"]:cols["rb"] + R] = w_rb

    # extended read->output block: per-head w_or plus an identity block that places
    # the read vector itself at output lanes O + r*W : O + (r+1)*W.
    eye = np.eye(W, dtype=np.float32)
    for r in range(R):
        rs = slice(rows["wor"] + r * W, rows["wor"] + (r + 1) * W)
        slab[rs, :O] = w_or[r]
        slab[rs, O + r * W:O + (r + 1) * W] = eye

    # output bias in output lane layout
    slab[rows["bo"], :O] = b_o[0]

    return jnp.asarray(slab)


# -----------------------------------------------------------------------------
# Main
# -----------------------------------------------------------------------------
if __name__ == "__main__":
    # Small sizes consistent with the module's constructor arguments.
    B = 2             # batch
    INPUT_SIZE = 16
    HIDDEN_SIZE = 32
    OUTPUT_SIZE = 16
    MEM_SIZE = 8      # number of memory slots
    MEM_DIM = 16      # width of each slot
    READ_HEADS = 2

    key = jax.random.PRNGKey(0)
    k_x, k_s, k_m, k_l, k_p = jax.random.split(key, 5)

    x = jax.random.normal(k_x, (B, INPUT_SIZE), jnp.float32)
    prev_state = jax.random.normal(k_s, (B, HIDDEN_SIZE), jnp.float32)
    memory = jax.random.normal(k_m, (B, MEM_SIZE, MEM_DIM), jnp.float32) * 0.1
    link_matrix = jnp.zeros((B, MEM_SIZE, MEM_SIZE), jnp.float32)

    params = init_params(k_p, INPUT_SIZE, HIDDEN_SIZE, OUTPUT_SIZE,
                         MEM_SIZE, MEM_DIM, READ_HEADS)
    slab = jax.block_until_ready(pack_params(params))  # packed once, one DMA per call

    forward = make_memory_network_forward(OUTPUT_SIZE, READ_HEADS)
    mem_new, link_new, controls, read_vec = forward(x, prev_state, memory, link_matrix, slab)

    jax.block_until_ready((mem_new, link_new, controls, read_vec))

    assert mem_new.shape == (B, MEM_SIZE, MEM_DIM)
    assert link_new.shape == (B, MEM_SIZE, MEM_SIZE)
    assert controls.shape == (B, OUTPUT_SIZE)
    assert read_vec.shape == (B, READ_HEADS, MEM_DIM)
    assert bool(jnp.all(jnp.isfinite(mem_new)))
    assert bool(jnp.all(jnp.isfinite(link_new)))
    assert bool(jnp.all(jnp.isfinite(controls)))
    assert bool(jnp.all(jnp.isfinite(read_vec)))

    print("KERNEL_OK")
</pallas_src>

<mosaic_0001>
module attributes {stable_mosaic.version = 11 : i64} {
  func.func @kernel(%arg0: memref<2x16xf32, #tpu.memory_space<vmem>>, %arg1: memref<2x32xf32, #tpu.memory_space<vmem>>, %arg2: memref<2x8x16xf32, #tpu.memory_space<vmem>>, %arg3: memref<2x8x8xf32, #tpu.memory_space<vmem>>, %arg4: memref<224x128xf32, #tpu.memory_space<vmem>>, %arg5: memref<2x8x16xf32, #tpu.memory_space<vmem>>, %arg6: memref<2x8x8xf32, #tpu.memory_space<vmem>>, %arg7: memref<2x128xf32, #tpu.memory_space<vmem>>) attributes {dimension_semantics = [], scalar_prefetch = 0 : i64, scratch_operands = 0 : i64, tpu.core_type = #tpu.core_type<tc>} {
    %c0 = arith.constant 0 : index
    %c0_0 = arith.constant 0 : index
    %0 = vector.load %arg0[%c0, %c0_0] : memref<2x16xf32, #tpu.memory_space<vmem>>, vector<2x16xf32>
    %c0_1 = arith.constant 0 : index
    %c0_2 = arith.constant 0 : index
    %1 = vector.load %arg1[%c0_1, %c0_2] : memref<2x32xf32, #tpu.memory_space<vmem>>, vector<2x32xf32>
    %c0_3 = arith.constant 0 : index
    %c0_4 = arith.constant 0 : index
    %c0_5 = arith.constant 0 : index
    %2 = vector.load %arg2[%c0_3, %c0_4, %c0_5] : memref<2x8x16xf32, #tpu.memory_space<vmem>>, vector<2x8x16xf32>
    %c0_6 = arith.constant 0 : index
    %c0_7 = arith.constant 0 : index
    %c0_8 = arith.constant 0 : index
    %3 = vector.load %arg3[%c0_6, %c0_7, %c0_8] : memref<2x8x8xf32, #tpu.memory_space<vmem>>, vector<2x8x8xf32>
    %c0_9 = arith.constant 0 : index
    %c0_10 = arith.constant 0 : index
    %4 = vector.load %arg4[%c0_9, %c0_10] : memref<224x128xf32, #tpu.memory_space<vmem>>, vector<16x128xf32>
    %cst = arith.constant dense<0.000000e+00> : vector<2x128xf32>
    %5 = tpu.matmul %0, %4, %cst {dimension_numbers = #tpu.dot_dimension_numbers<[1], [0], [0], [1], [0, 0, 1, 1], [], []>} : vector<2x16xf32>, vector<16x128xf32>, vector<2x128xf32> -> vector<2x128xf32>
    %c16 = arith.constant 16 : index
    %c0_11 = arith.constant 0 : index
    %6 = vector.load %arg4[%c16, %c0_11] : memref<224x128xf32, #tpu.memory_space<vmem>>, vector<32x128xf32>
    %cst_12 = arith.constant dense<0.000000e+00> : vector<2x128xf32>
    %7 = tpu.matmul %1, %6, %cst_12 {dimension_numbers = #tpu.dot_dimension_numbers<[1], [0], [0], [1], [0, 0, 1, 1], [], []>} : vector<2x32xf32>, vector<32x128xf32>, vector<2x128xf32> -> vector<2x128xf32>
    %8 = arith.addf %5, %7 : vector<2x128xf32>
    %c208 = arith.constant 208 : index
    %c0_13 = arith.constant 0 : index
    %9 = vector.load %arg4[%c208, %c0_13] : memref<224x128xf32, #tpu.memory_space<vmem>>, vector<1x128xf32>
    %10 = vector.broadcast %9 : vector<1x128xf32> to vector<2x128xf32>
    %11 = arith.addf %8, %10 : vector<2x128xf32>
    %12 = math.tanh %11 : vector<2x128xf32>
    %c48 = arith.constant 48 : index
    %c0_14 = arith.constant 0 : index
    %13 = vector.load %arg4[%c48, %c0_14] : memref<224x128xf32, #tpu.memory_space<vmem>>, vector<128x128xf32>
    %cst_15 = arith.constant dense<0.000000e+00> : vector<2x128xf32>
    %14 = tpu.matmul %12, %13, %cst_15 {dimension_numbers = #tpu.dot_dimension_numbers<[1], [0], [0], [1], [0, 0, 1, 1], [], []>} : vector<2x128xf32>, vector<128x128xf32>, vector<2x128xf32> -> vector<2x128xf32>
    %15 = vector.extract_strided_slice %14 {offsets = [0, 16], sizes = [2, 16], strides = [1, 1]} : vector<2x128xf32> to vector<2x16xf32>
    %16 = vector.extract_strided_slice %14 {offsets = [0, 32], sizes = [2, 16], strides = [1, 1]} : vector<2x128xf32> to vector<2x16xf32>
    %17 = arith.negf %16 : vector<2x16xf32>
    %18 = math.exp %17 : vector<2x16xf32>
    %cst_16 = arith.constant 1.000000e+00 : f32
    %19 = vector.broadcast %cst_16 : f32 to vector<2x16xf32>
    %20 = arith.addf %19, %18 : vector<2x16xf32>
    %21 = arith.divf %19, %20 : vector<2x16xf32>
    %22 = vector.extract_strided_slice %14 {offsets = [0, 48], sizes = [2, 16], strides = [1, 1]} : vector<2x128xf32> to vector<2x16xf32>
    %23 = vector.extract_strided_slice %14 {offsets = [0, 96], sizes = [2, 1], strides = [1, 1]} : vector<2x128xf32> to vector<2x1xf32>
    %cst_17 = arith.constant 0.000000e+00 : f32
    %24 = vector.broadcast %cst_17 : f32 to vector<2x1xf32>
    %25 = arith.maximumf %23, %24 : vector<2x1xf32>
    %26 = vector.broadcast %cst_17 : f32 to vector<2x1xf32>
    %27 = arith.subf %23, %26 : vector<2x1xf32>
    %28 = arith.cmpf one, %27, %27 : vector<2x1xf32>
    %29 = vector.broadcast %cst_17 : f32 to vector<2x1xf32>
    %30 = arith.addf %23, %29 : vector<2x1xf32>
    %31 = math.absf %27 : vector<2x1xf32>
    %cst_18 = arith.constant 0.000000e+00 : f32
    %32 = vector.broadcast %cst_18 : f32 to vector<2x1xf32>
    %33 = arith.subf %32, %31 : vector<2x1xf32>
    %34 = math.exp %33 : vector<2x1xf32>
    %35 = math.log1p %34 : vector<2x1xf32>
    %36 = arith.addf %25, %35 : vector<2x1xf32>
    %37 = arith.select %28, %30, %36 : vector<2x1xi1>, vector<2x1xf32>
    %cst_19 = arith.constant 1.000000e+00 : f32
    %38 = vector.broadcast %cst_19 : f32 to vector<2x1xf32>
    %39 = arith.addf %38, %37 : vector<2x1xf32>
    %40 = vector.extract_strided_slice %14 {offsets = [0, 97], sizes = [2, 1], strides = [1, 1]} : vector<2x128xf32> to vector<2x1xf32>
    %41 = arith.negf %40 : vector<2x1xf32>
    %42 = math.exp %41 : vector<2x1xf32>
    %cst_20 = arith.constant 1.000000e+00 : f32
    %43 = vector.broadcast %cst_20 : f32 to vector<2x1xf32>
    %44 = arith.addf %43, %42 : vector<2x1xf32>
    %45 = arith.divf %43, %44 : vector<2x1xf32>
    %46 = vector.extract_strided_slice %14 {offsets = [0, 98], sizes = [2, 2], strides = [1, 1]} : vector<2x128xf32> to vector<2x2xf32>
    %cst_21 = arith.constant 0.000000e+00 : f32
    %47 = vector.broadcast %cst_21 : f32 to vector<2x2xf32>
    %48 = arith.maximumf %46, %47 : vector<2x2xf32>
    %49 = vector.broadcast %cst_21 : f32 to vector<2x2xf32>
    %50 = arith.subf %46, %49 : vector<2x2xf32>
    %51 = arith.cmpf one, %50, %50 : vector<2x2xf32>
    %52 = vector.broadcast %cst_21 : f32 to vector<2x2xf32>
    %53 = arith.addf %46, %52 : vector<2x2xf32>
    %54 = math.absf %50 : vector<2x2xf32>
    %cst_22 = arith.constant 0.000000e+00 : f32
    %55 = vector.broadcast %cst_22 : f32 to vector<2x2xf32>
    %56 = arith.subf %55, %54 : vector<2x2xf32>
    %57 = math.exp %56 : vector<2x2xf32>
    %58 = math.log1p %57 : vector<2x2xf32>
    %59 = arith.addf %48, %58 : vector<2x2xf32>
    %60 = arith.select %51, %53, %59 : vector<2x2xi1>, vector<2x2xf32>
    %cst_23 = arith.constant 1.000000e+00 : f32
    %61 = vector.broadcast %cst_23 : f32 to vector<2x2xf32>
    %62 = arith.addf %61, %60 : vector<2x2xf32>
    %63 = arith.mulf %2, %2 : vector<2x8x16xf32>
    %cst_24 = arith.constant dense<0.000000e+00> : vector<2x8xf32>
    %64 = vector.multi_reduction <add>, %63, %cst_24 [2] : vector<2x8x16xf32> to vector<2x8xf32>
    %65 = math.sqrt %64 : vector<2x8xf32>
    %66 = arith.mulf %15, %15 : vector<2x16xf32>
    %cst_25 = arith.constant dense<0.000000e+00> : vector<2xf32>
    %67 = vector.multi_reduction <add>, %66, %cst_25 [1] : vector<2x16xf32> to vector<2xf32>
    %68 = vector.shape_cast %67 : vector<2xf32> to vector<2x1xf32>
    %69 = math.sqrt %68 : vector<2x1xf32>
    %70 = vector.shape_cast %15 : vector<2x16xf32> to vector<2x1x16xf32>
    %71 = vector.broadcast %70 : vector<2x1x16xf32> to vector<2x8x16xf32>
    %72 = arith.mulf %2, %71 : vector<2x8x16xf32>
    %cst_26 = arith.constant dense<0.000000e+00> : vector<2x8xf32>
    %73 = vector.multi_reduction <add>, %72, %cst_26 [2] : vector<2x8x16xf32> to vector<2x8xf32>
    %74 = vector.broadcast %69 : vector<2x1xf32> to vector<2x8xf32>
    %75 = arith.mulf %65, %74 : vector<2x8xf32>
    %cst_27 = arith.constant 9.99999997E-7 : f32
    %76 = vector.broadcast %cst_27 : f32 to vector<2x8xf32>
    %77 = arith.addf %75, %76 : vector<2x8xf32>
    %78 = arith.divf %73, %77 : vector<2x8xf32>
    %79 = vector.broadcast %39 : vector<2x1xf32> to vector<2x8xf32>
    %80 = arith.mulf %79, %78 : vector<2x8xf32>
    %cst_28 = arith.constant dense<0xFF800000> : vector<2xf32>
    %81 = vector.multi_reduction <maximumf>, %80, %cst_28 [1] : vector<2x8xf32> to vector<2xf32>
    %82 = vector.shape_cast %81 : vector<2xf32> to vector<2x1xf32>
    %83 = vector.broadcast %82 : vector<2x1xf32> to vector<2x8xf32>
    %84 = arith.subf %80, %83 : vector<2x8xf32>
    %85 = math.exp %84 : vector<2x8xf32>
    %cst_29 = arith.constant dense<0.000000e+00> : vector<2xf32>
    %86 = vector.multi_reduction <add>, %85, %cst_29 [1] : vector<2x8xf32> to vector<2xf32>
    %87 = vector.shape_cast %86 : vector<2xf32> to vector<2x1xf32>
    %88 = vector.broadcast %87 : vector<2x1xf32> to vector<2x8xf32>
    %89 = arith.divf %85, %88 : vector<2x8xf32>
    %90 = vector.broadcast %45 : vector<2x1xf32> to vector<2x8xf32>
    %91 = arith.mulf %90, %89 : vector<2x8xf32>
    %92 = vector.shape_cast %91 : vector<2x8xf32> to vector<2x8x1xf32>
    %93 = vector.shape_cast %21 : vector<2x16xf32> to vector<2x1x16xf32>
    %94 = vector.broadcast %92 : vector<2x8x1xf32> to vector<2x8x16xf32>
    %95 = vector.broadcast %93 : vector<2x1x16xf32> to vector<2x8x16xf32>
    %96 = arith.mulf %94, %95 : vector<2x8x16xf32>
    %cst_30 = arith.constant 1.000000e+00 : f32
    %97 = vector.broadcast %cst_30 : f32 to vector<2x8x16xf32>
    %98 = arith.subf %97, %96 : vector<2x8x16xf32>
    %99 = arith.mulf %2, %98 : vector<2x8x16xf32>
    %100 = vector.shape_cast %22 : vector<2x16xf32> to vector<2x1x16xf32>
    %101 = vector.broadcast %92 : vector<2x8x1xf32> to vector<2x8x16xf32>
    %102 = vector.broadcast %100 : vector<2x1x16xf32> to vector<2x8x16xf32>
    %103 = arith.mulf %101, %102 : vector<2x8x16xf32>
    %104 = arith.addf %99, %103 : vector<2x8x16xf32>
    %c0_31 = arith.constant 0 : index
    %c0_32 = arith.constant 0 : index
    %c0_33 = arith.constant 0 : index
    %105 = vector.load %arg5[%c0_31, %c0_32, %c0_33] : memref<2x8x16xf32, #tpu.memory_space<vmem>>, vector<2x8x16xf32>
    tpu.vector_store %arg5[%c0_31, %c0_32, %c0_33], %104 {strides = array<i32>} : memref<2x8x16xf32, #tpu.memory_space<vmem>>, vector<2x8x16xf32>,
    %106 = tpu.iota {dimensions = array<i32: 0>} : vector<8x8xi32>
    %107 = tpu.iota {dimensions = array<i32: 1>} : vector<8x8xi32>
    %108 = arith.cmpi ne, %106, %107 : vector<8x8xi32>
    %109 = arith.extui %108 : vector<8x8xi1> to vector<8x8xi32>
    %110 = arith.sitofp %109 : vector<8x8xi32> to vector<8x8xf32>
    %111 = vector.shape_cast %91 : vector<2x8xf32> to vector<2x8x1xf32>
    %112 = vector.shape_cast %91 : vector<2x8xf32> to vector<2x1x8xf32>
    %cst_34 = arith.constant 1.000000e+00 : f32
    %113 = vector.broadcast %cst_34 : f32 to vector<2x8x1xf32>
    %114 = arith.subf %113, %111 : vector<2x8x1xf32>
    %115 = vector.broadcast %114 : vector<2x8x1xf32> to vector<2x8x8xf32>
    %116 = vector.broadcast %112 : vector<2x1x8xf32> to vector<2x8x8xf32>
    %117 = arith.subf %115, %116 : vector<2x8x8xf32>
    %118 = arith.mulf %117, %3 : vector<2x8x8xf32>
    %119 = vector.broadcast %111 : vector<2x8x1xf32> to vector<2x8x8xf32>
    %120 = vector.broadcast %112 : vector<2x1x8xf32> to vector<2x8x8xf32>
    %121 = arith.mulf %119, %120 : vector<2x8x8xf32>
    %122 = arith.addf %118, %121 : vector<2x8x8xf32>
    %123 = vector.shape_cast %110 : vector<8x8xf32> to vector<1x8x8xf32>
    %124 = vector.broadcast %123 : vector<1x8x8xf32> to vector<2x8x8xf32>
    %125 = arith.mulf %122, %124 : vector<2x8x8xf32>
    %c0_35 = arith.constant 0 : index
    %c0_36 = arith.constant 0 : index
    %c0_37 = arith.constant 0 : index
    %126 = vector.load %arg6[%c0_35, %c0_36, %c0_37] : memref<2x8x8xf32, #tpu.memory_space<vmem>>, vector<2x8x8xf32>
    tpu.vector_store %arg6[%c0_35, %c0_36, %c0_37], %125 {strides = array<i32>} : memref<2x8x8xf32, #tpu.memory_space<vmem>>, vector<2x8x8xf32>,
    %127 = tpu.iota {dimensions = array<i32: 1>} : vector<1x128xi32>
    %c16_i32 = arith.constant 16 : i32
    %128 = vector.broadcast %c16_i32 : i32 to vector<1x128xi32>
    %129 = arith.cmpi slt, %127, %128 : vector<1x128xi32>
    %130 = arith.extui %129 : vector<1x128xi1> to vector<1x128xi32>
    %131 = arith.sitofp %130 : vector<1x128xi32> to vector<1x128xf32>
    %132 = vector.broadcast %131 : vector<1x128xf32> to vector<2x128xf32>
    %133 = arith.mulf %14, %132 : vector<2x128xf32>
    %c216 = arith.constant 216 : index
    %c0_38 = arith.constant 0 : index
    %134 = vector.load %arg4[%c216, %c0_38] : memref<224x128xf32, #tpu.memory_space<vmem>>, vector<1x128xf32>
    %135 = vector.broadcast %134 : vector<1x128xf32> to vector<2x128xf32>
    %136 = arith.addf %133, %135 : vector<2x128xf32>
    %137 = arith.mulf %104, %104 : vector<2x8x16xf32>
    %cst_39 = arith.constant dense<0.000000e+00> : vector<2x8xf32>
    %138 = vector.multi_reduction <add>, %137, %cst_39 [2] : vector<2x8x16xf32> to vector<2x8xf32>
    %139 = math.sqrt %138 : vector<2x8xf32>
    %140 = vector.extract_strided_slice %14 {offsets = [0, 64], sizes = [2, 16], strides = [1, 1]} : vector<2x128xf32> to vector<2x16xf32>
    %141 = arith.mulf %140, %140 : vector<2x16xf32>
    %cst_40 = arith.constant dense<0.000000e+00> : vector<2xf32>
    %142 = vector.multi_reduction <add>, %141, %cst_40 [1] : vector<2x16xf32> to vector<2xf32>
    %143 = vector.shape_cast %142 : vector<2xf32> to vector<2x1xf32>
    %144 = math.sqrt %143 : vector<2x1xf32>
    %145 = vector.shape_cast %140 : vector<2x16xf32> to vector<2x1x16xf32>
    %146 = vector.broadcast %145 : vector<2x1x16xf32> to vector<2x8x16xf32>
    %147 = arith.mulf %104, %146 : vector<2x8x16xf32>
    %cst_41 = arith.constant dense<0.000000e+00> : vector<2x8xf32>
    %148 = vector.multi_reduction <add>, %147, %cst_41 [2] : vector<2x8x16xf32> to vector<2x8xf32>
    %149 = vector.broadcast %144 : vector<2x1xf32> to vector<2x8xf32>
    %150 = arith.mulf %139, %149 : vector<2x8xf32>
    %cst_42 = arith.constant 9.99999997E-7 : f32
    %151 = vector.broadcast %cst_42 : f32 to vector<2x8xf32>
    %152 = arith.addf %150, %151 : vector<2x8xf32>
    %153 = arith.divf %148, %152 : vector<2x8xf32>
    %154 = vector.extract_strided_slice %62 {offsets = [0, 0], sizes = [2, 1], strides = [1, 1]} : vector<2x2xf32> to vector<2x1xf32>
    %155 = vector.broadcast %154 : vector<2x1xf32> to vector<2x8xf32>
    %156 = arith.mulf %155, %153 : vector<2x8xf32>
    %cst_43 = arith.constant dense<0xFF800000> : vector<2xf32>
    %157 = vector.multi_reduction <maximumf>, %156, %cst_43 [1] : vector<2x8xf32> to vector<2xf32>
    %158 = vector.shape_cast %157 : vector<2xf32> to vector<2x1xf32>
    %159 = vector.broadcast %158 : vector<2x1xf32> to vector<2x8xf32>
    %160 = arith.subf %156, %159 : vector<2x8xf32>
    %161 = math.exp %160 : vector<2x8xf32>
    %cst_44 = arith.constant dense<0.000000e+00> : vector<2xf32>
    %162 = vector.multi_reduction <add>, %161, %cst_44 [1] : vector<2x8xf32> to vector<2xf32>
    %163 = vector.shape_cast %162 : vector<2xf32> to vector<2x1xf32>
    %164 = vector.broadcast %163 : vector<2x1xf32> to vector<2x8xf32>
    %165 = arith.divf %161, %164 : vector<2x8xf32>
    %166 = vector.shape_cast %165 : vector<2x8xf32> to vector<2x8x1xf32>
    %167 = vector.broadcast %166 : vector<2x8x1xf32> to vector<2x8x16xf32>
    %168 = arith.mulf %167, %104 : vector<2x8x16xf32>
    %cst_45 = arith.constant dense<0.000000e+00> : vector<2x16xf32>
    %169 = vector.multi_reduction <add>, %168, %cst_45 [1] : vector<2x8x16xf32> to vector<2x16xf32>
    %c176 = arith.constant 176 : index
    %c0_46 = arith.constant 0 : index
    %170 = vector.load %arg4[%c176, %c0_46] : memref<224x128xf32, #tpu.memory_space<vmem>>, vector<16x128xf32>
    %171 = vector.shape_cast %169 : vector<2x16xf32> to vector<2x16x1xf32>
    %172 = vector.shape_cast %170 : vector<16x128xf32> to vector<1x16x128xf32>
    %173 = vector.broadcast %171 : vector<2x16x1xf32> to vector<2x16x128xf32>
    %174 = vector.broadcast %172 : vector<1x16x128xf32> to vector<2x16x128xf32>
    %175 = arith.mulf %173, %174 : vector<2x16x128xf32>
    %cst_47 = arith.constant dense<0.000000e+00> : vector<2x128xf32>
    %176 = vector.multi_reduction <add>, %175, %cst_47 [1] : vector<2x16x128xf32> to vector<2x128xf32>
    %177 = arith.addf %136, %176 : vector<2x128xf32>
    %178 = vector.extract_strided_slice %14 {offsets = [0, 80], sizes = [2, 16], strides = [1, 1]} : vector<2x128xf32> to vector<2x16xf32>
    %179 = arith.mulf %178, %178 : vector<2x16xf32>
    %cst_48 = arith.constant dense<0.000000e+00> : vector<2xf32>
    %180 = vector.multi_reduction <add>, %179, %cst_48 [1] : vector<2x16xf32> to vector<2xf32>
    %181 = vector.shape_cast %180 : vector<2xf32> to vector<2x1xf32>
    %182 = math.sqrt %181 : vector<2x1xf32>
    %183 = vector.shape_cast %178 : vector<2x16xf32> to vector<2x1x16xf32>
    %184 = vector.broadcast %183 : vector<2x1x16xf32> to vector<2x8x16xf32>
    %185 = arith.mulf %104, %184 : vector<2x8x16xf32>
    %cst_49 = arith.constant dense<0.000000e+00> : vector<2x8xf32>
    %186 = vector.multi_reduction <add>, %185, %cst_49 [2] : vector<2x8x16xf32> to vector<2x8xf32>
    %187 = vector.broadcast %182 : vector<2x1xf32> to vector<2x8xf32>
    %188 = arith.mulf %139, %187 : vector<2x8xf32>
    %cst_50 = arith.constant 9.99999997E-7 : f32
    %189 = vector.broadcast %cst_50 : f32 to vector<2x8xf32>
    %190 = arith.addf %188, %189 : vector<2x8xf32>
    %191 = arith.divf %186, %190 : vector<2x8xf32>
    %192 = vector.extract_strided_slice %62 {offsets = [0, 1], sizes = [2, 1], strides = [1, 1]} : vector<2x2xf32> to vector<2x1xf32>
    %193 = vector.broadcast %192 : vector<2x1xf32> to vector<2x8xf32>
    %194 = arith.mulf %193, %191 : vector<2x8xf32>
    %cst_51 = arith.constant dense<0xFF800000> : vector<2xf32>
    %195 = vector.multi_reduction <maximumf>, %194, %cst_51 [1] : vector<2x8xf32> to vector<2xf32>
    %196 = vector.shape_cast %195 : vector<2xf32> to vector<2x1xf32>
    %197 = vector.broadcast %196 : vector<2x1xf32> to vector<2x8xf32>
    %198 = arith.subf %194, %197 : vector<2x8xf32>
    %199 = math.exp %198 : vector<2x8xf32>
    %cst_52 = arith.constant dense<0.000000e+00> : vector<2xf32>
    %200 = vector.multi_reduction <add>, %199, %cst_52 [1] : vector<2x8xf32> to vector<2xf32>
    %201 = vector.shape_cast %200 : vector<2xf32> to vector<2x1xf32>
    %202 = vector.broadcast %201 : vector<2x1xf32> to vector<2x8xf32>
    %203 = arith.divf %199, %202 : vector<2x8xf32>
    %204 = vector.shape_cast %203 : vector<2x8xf32> to vector<2x8x1xf32>
    %205 = vector.broadcast %204 : vector<2x8x1xf32> to vector<2x8x16xf32>
    %206 = arith.mulf %205, %104 : vector<2x8x16xf32>
    %cst_53 = arith.constant dense<0.000000e+00> : vector<2x16xf32>
    %207 = vector.multi_reduction <add>, %206, %cst_53 [1] : vector<2x8x16xf32> to vector<2x16xf32>
    %c192 = arith.constant 192 : index
    %c0_54 = arith.constant 0 : index
    %208 = vector.load %arg4[%c192, %c0_54] : memref<224x128xf32, #tpu.memory_space<vmem>>, vector<16x128xf32>
    %209 = vector.shape_cast %207 : vector<2x16xf32> to vector<2x16x1xf32>
    %210 = vector.shape_cast %208 : vector<16x128xf32> to vector<1x16x128xf32>
    %211 = vector.broadcast %209 : vector<2x16x1xf32> to vector<2x16x128xf32>
    %212 = vector.broadcast %210 : vector<1x16x128xf32> to vector<2x16x128xf32>
    %213 = arith.mulf %211, %212 : vector<2x16x128xf32>
    %cst_55 = arith.constant dense<0.000000e+00> : vector<2x128xf32>
    %214 = vector.multi_reduction <add>, %213, %cst_55 [1] : vector<2x16x128xf32> to vector<2x128xf32>
    %215 = arith.addf %177, %214 : vector<2x128xf32>
    %c0_56 = arith.constant 0 : index
    %c0_57 = arith.constant 0 : index
    %216 = vector.load %arg7[%c0_56, %c0_57] : memref<2x128xf32, #tpu.memory_space<vmem>>, vector<2x128xf32>
    tpu.vector_store %arg7[%c0_56, %c0_57], %215 {strides = array<i32>} : memref<2x128xf32, #tpu.memory_space<vmem>>, vector<2x128xf32>,
    return
  }
}

</mosaic_0001>

<llo_original>
// kernel: _forward.1
$region0: #{_forward.1}
  #allocation0 [shape = 'u32[]', space=smem, size = 0x4, offset = 0x4, fixed_abs, tag = 'smem constant byte address 0x4 - core index']
  #allocation1 [shape = 'u32[144,128]{1,0:T(1,128)}', space=vmem, size = 0x12000, scoped, tag = 'internal scratch']
  %s0 = inlined_call_operand.vmem [shape: f32[2,16], index: 0, kind: input, shape index: {}]
  %s1 = inlined_call_operand.vmem [shape: f32[2,32], index: 1, kind: input, shape index: {}]
  %s2 = inlined_call_operand.vmem [shape: f32[2,8,16], index: 2, kind: input, shape index: {}, may-alias: {2,5}]
  %s3 = inlined_call_operand.vmem [shape: f32[2,8,8], index: 3, kind: input, shape index: {}, may-alias: {3,6}]
  %s4 = inlined_call_operand.hbm [shape: f32[224,128], index: 4, kind: input, shape index: {}]
  %s5 = inlined_call_operand.vmem [shape: f32[2,8,16], index: 5, kind: output, shape index: {0}, may-alias: {2,5}]
  %s6 = inlined_call_operand.vmem [shape: f32[2,8,8], index: 6, kind: output, shape index: {1}, may-alias: {3,6}]
  %s7 = inlined_call_operand.vmem [shape: f32[2,128], index: 7, kind: output, shape index: {2}]
  %8 = xla_tuple %s5, %s6, %s7
  %s9 = sld [smem:[#allocation0]]
  $region50: #{_forward.1} parent=0
    _
  %s11 = ssub.s32 1, %s9
  %s12 = scalar_select 0, %s11, %s9
  $region1: #{_forward.1} parent=0
    #allocation2 [shape = 'u8[114688]{0}', space=vmem, size = 0x1c000, scoped, tag = 'input window, operand 4, single buffered']
    #allocation3 [shape = 's32[1]{0}', space=sflag, size = 0x4, scoped, tag = 'scoped memory for _forward.1']
    %13 = vsyncpa [#allocation3], 0
    // Predicated region
    $region2: #{_forward.1} parent=1 // pred_check
      _
    $region3: #{_forward.1} parent=1 // pred_check_branch
      %15 = sbr.rel (0) target = $region5
    $region4: #{_forward.1} parent=1 // pred_region
      _
    $region5: #{_forward.1} parent=1 // pred_fallthru
      _
    // Predicated region
    $region6: #{_forward.1} parent=1 // pred_check
      _
    $region7: #{_forward.1} parent=1 // pred_check_branch
      %17 = sbr.rel (0) target = $region9
    $region8: #{_forward.1} parent=1 // pred_region
      _
    $region9: #{_forward.1} parent=1 // pred_fallthru
      _
    // Predicated region
    $region10: #{_forward.1} parent=1 // pred_check
      _
    $region11: #{_forward.1} parent=1 // pred_check_branch
      %19 = sbr.rel (0) target = $region13
    $region12: #{_forward.1} parent=1 // pred_region
      _
    $region13: #{_forward.1} parent=1 // pred_fallthru
      _
    // Predicated region
    $region14: #{_forward.1} parent=1 // pred_check
      _
    $region15: #{_forward.1} parent=1 // pred_check_branch
      %21 = sbr.rel (0) target = $region17
    $region16: #{_forward.1} parent=1 // pred_region
      _
    $region17: #{_forward.1} parent=1 // pred_fallthru
      _
    // Predicated region
    $region18: #{_forward.1} parent=1 // pred_check
      _
    $region19: #{_forward.1} parent=1 // pred_check_branch
      %23 = sbr.rel (0) target = $region21
    $region20: #{_forward.1} parent=1 // pred_region
      %s25 = ssub.s32 3584, 3584
      %26 = vsyncadd [#allocation3], %s25
      %s27 = sshll.u32 [#allocation2], 4
      %s28 = int_to_ptr.vmem [resolvable:$true] %s27
      %33 = dma.hbm_to_vmem [thread:$0]  %s4, 3584, %s28, [#allocation3], 128, 128, 8
    $region21: #{_forward.1} parent=1 // pred_fallthru
      _
    // Predicated region
    $region22: #{_forward.1} parent=1 // pred_check
      _
    $region23: #{_forward.1} parent=1 // pred_check_branch
      %35 = sbr.rel (0) target = $region25
    $region24: #{_forward.1} parent=1 // pred_region
      %36 = dma.done [#allocation3], 3584
    $region25: #{_forward.1} parent=1 // pred_fallthru
      _
    %v37 = vld [vmem:[%s0] sm:$0x3]
    %v38 = vld [vmem:[%s1] sm:$0x3]
    %v39 = vld [vmem:[%s2] sm:$0xff]
    %v40 = vld [vmem:[%s2 + $0x8] sm:$0xff]
    %v41 = vld [vmem:[%s3] sm:$0xff]
    %v42 = vld [vmem:[%s3 + $0x8] sm:$0xff]
    %v43 = vld [vmem:[#allocation2] sm:$0xff]
    %v44 = vld [vmem:[#allocation2 + $0x8] sm:$0xff]
    %v45 = vld [vmem:[#allocation2 + $0x10] sm:$0xff]
    %v46 = vld [vmem:[#allocation2 + $0x18] sm:$0xff]
    %v47 = vld [vmem:[#allocation2 + $0x20] sm:$0xff]
    %v48 = vld [vmem:[#allocation2 + $0x28] sm:$0xff]
    %vm49 = vcmask 261120
    %v51 = vsel %vm49, %v38, 0
    %53 = vmatprep.subr.mxu0 0.0
    %54 = vmatpush1.msra.mxu0 %v45
    %55 = vmatprep.subr.mxu0 0.0
    %56 = vmatpush1.msra.mxu0 %v46
    %57 = vmatprep.subr.mxu0 0.0
    %58 = vmatpush1.msra.mxu0 %v47
    %59 = vmatprep.subr.mxu0 0.0
    %60 = vmatpush1.msra.mxu0 %v48
    %61 = vmatprep.subr.mxu0 0.0
    %62 = vmatpush1.msra.mxu0 0.0
    %63 = vmatprep.subr.mxu0 0.0
    %64 = vmatpush1.msra.mxu0 0.0
    %65 = vmatprep.subr.mxu0 0.0
    %66 = vmatpush1.msra.mxu0 0.0
    %67 = vmatprep.subr.mxu0 0.0
    %68 = vmatpush1.msra.mxu0 0.0
    %69 = vmatprep.subr.mxu0 0.0
    %70 = vmatpush1.msra.mxu0 0.0
    %71 = vmatprep.subr.mxu0 0.0
    %72 = vmatpush1.msra.mxu0 0.0
    %73 = vmatprep.subr.mxu0 0.0
    %74 = vmatpush1.msra.mxu0 0.0
    %75 = vmatprep.subr.mxu0 0.0
    %76 = vmatpush1.msra.mxu0 0.0
    %77 = vmatprep.subr.mxu0 0.0
    %78 = vmatpush1.msra.mxu0 0.0
    %79 = vmatprep.subr.mxu0 0.0
    %80 = vmatpush1.msra.mxu0 0.0
    %81 = vmatprep.subr.mxu0 0.0
    %82 = vmatpush1.msra.mxu0 0.0
    %83 = vmatprep.subr.mxu0 0.0
    %84 = vmatpush1.msra.mxu0 0.0
    %85 = vmatprep.subr.mxu0 0.0
    %86 = vmatpush1.msra.mxu0 0.0
    %87 = vmatprep.subr.mxu0 0.0
    %88 = vmatpush1.msra.mxu0 0.0
    %89 = vmatprep.subr.mxu0 0.0
    %90 = vmatpush1.msra.mxu0 0.0
    %91 = vmatprep.subr.mxu0 0.0
    %92 = vmatpush1.msra.mxu0 0.0
    %93 = vmatprep.subr.mxu0 0.0
    %94 = vmatpush1.msra.mxu0 0.0
    %95 = vmatprep.subr.mxu0 0.0
    %96 = vmatpush1.msra.mxu0 0.0
    %97 = vmatprep.subr.mxu0 0.0
    %98 = vmatpush1.msra.mxu0 0.0
    %99 = vmatprep.subr.mxu0 0.0
    %100 = vmatpush1.msra.mxu0 0.0
    %101 = vmatprep.subr.mxu0 0.0
    %102 = vmatpush1.msra.mxu0 0.0
    %103 = vmatprep.subr.mxu0 0.0
    %104 = vmatpush1.msra.mxu0 0.0
    %105 = vmatprep.subr.mxu0 0.0
    %106 = vmatpush1.msra.mxu0 0.0
    %107 = vmatprep.subr.mxu0 0.0
    %108 = vmatpush1.msra.mxu0 0.0
    %109 = vmatprep.subr.mxu0 0.0
    %110 = vmatpush1.msra.mxu0 0.0
    %111 = vmatprep.subr.mxu0 0.0
    %112 = vmatpush1.msra.mxu0 0.0
    %113 = vmatprep.subr.mxu0 0.0
    %114 = vmatpush1.msra.mxu0 0.0
    %115 = vmatprep.subr.mxu0 0.0
    %116 = vmatpush1.msra.mxu0 0.0
    %117 = vmatprep.mubr.f32.mxu0 0.0
    %118 = vmatmul.mubr.f32.gmra.mrb[0].mxu0 %v51
    %v119 = vpop.f32.mrb[0].mxu0
    %v120 = vadd.f32 0.0, %v119
    %v121 = vpop.f32.mrb[0].mxu0
    %122 = vdwg.mxu0
    %vm123 = vcmask 130048
    %v125 = vsel %vm123, %v37, 0
    %127 = vmatprep.subr.mxu0 0.0
    %128 = vmatpush1.msra.mxu0 %v43
    %129 = vmatprep.subr.mxu0 0.0
    %130 = vmatpush1.msra.mxu0 %v44
    %131 = vmatprep.subr.mxu0 0.0
    %132 = vmatpush1.msra.mxu0 0.0
    %133 = vmatprep.subr.mxu0 0.0
    %134 = vmatpush1.msra.mxu0 0.0
    %135 = vmatprep.subr.mxu0 0.0
    %136 = vmatpush1.msra.mxu0 0.0
    %137 = vmatprep.subr.mxu0 0.0
    %138 = vmatpush1.msra.mxu0 0.0
    %139 = vmatprep.subr.mxu0 0.0
    %140 = vmatpush1.msra.mxu0 0.0
    %141 = vmatprep.subr.mxu0 0.0
    %142 = vmatpush1.msra.mxu0 0.0
    %143 = vmatprep.subr.mxu0 0.0
    %144 = vmatpush1.msra.mxu0 0.0
    %145 = vmatprep.subr.mxu0 0.0
    %146 = vmatpush1.msra.mxu0 0.0
    %147 = vmatprep.subr.mxu0 0.0
    %148 = vmatpush1.msra.mxu0 0.0
    %149 = vmatprep.subr.mxu0 0.0
    %150 = vmatpush1.msra.mxu0 0.0
    %151 = vmatprep.subr.mxu0 0.0
    %152 = vmatpush1.msra.mxu0 0.0
    %153 = vmatprep.subr.mxu0 0.0
    %154 = vmatpush1.msra.mxu0 0.0
    %155 = vmatprep.subr.mxu0 0.0
    %156 = vmatpush1.msra.mxu0 0.0
    %157 = vmatprep.subr.mxu0 0.0
    %158 = vmatpush1.msra.mxu0 0.0
    %159 = vmatprep.subr.mxu0 0.0
    %160 = vmatpush1.msra.mxu0 0.0
    %161 = vmatprep.subr.mxu0 0.0
    %162 = vmatpush1.msra.mxu0 0.0
    %163 = vmatprep.subr.mxu0 0.0
    %164 = vmatpush1.msra.mxu0 0.0
    %165 = vmatprep.subr.mxu0 0.0
    %166 = vmatpush1.msra.mxu0 0.0
    %167 = vmatprep.subr.mxu0 0.0
    %168 = vmatpush1.msra.mxu0 0.0
    %169 = vmatprep.subr.mxu0 0.0
    %170 = vmatpush1.msra.mxu0 0.0
    %171 = vmatprep.subr.mxu0 0.0
    %172 = vmatpush1.msra.mxu0 0.0
    %173 = vmatprep.subr.mxu0 0.0
    %174 = vmatpush1.msra.mxu0 0.0
    %175 = vmatprep.subr.mxu0 0.0
    %176 = vmatpush1.msra.mxu0 0.0
    %177 = vmatprep.subr.mxu0 0.0
    %178 = vmatpush1.msra.mxu0 0.0
    %179 = vmatprep.subr.mxu0 0.0
    %180 = vmatpush1.msra.mxu0 0.0
    %181 = vmatprep.subr.mxu0 0.0
    %182 = vmatpush1.msra.mxu0 0.0
    %183 = vmatprep.subr.mxu0 0.0
    %184 = vmatpush1.msra.mxu0 0.0
    %185 = vmatprep.subr.mxu0 0.0
    %186 = vmatpush1.msra.mxu0 0.0
    %187 = vmatprep.subr.mxu0 0.0
    %188 = vmatpush1.msra.mxu0 0.0
    %189 = vmatprep.subr.mxu0 0.0
    %190 = vmatpush1.msra.mxu0 0.0
    %191 = vmatprep.mubr.f32.mxu0 0.0
    %192 = vmatmul.mubr.f32.gmra.mrb[0].mxu0 %v125
    %v193 = vpop.f32.mrb[0].mxu0
    %v194 = vadd.f32 %v120, %v193
    %v195 = vpop.f32.mrb[0].mxu0
    %196 = vdwg.mxu0
    %v197 = vld [vmem:[#allocation2 + $0xd0] sm:$0x1]
    %v198 = vlaneseq
    %v199 = vshrl.u32 %v198, 7
    %v200 = vsub.s32 0, %v199
    %v201 = vrot.slane %v197, %v200
    %v202 = vadd.f32 %v194, %v201
    %v203 = vtanh.pop %v202
    %v204 = vld [vmem:[#allocation2 + $0x30] sm:$0xff]
    %v205 = vld [vmem:[#allocation2 + $0x38] sm:$0xff]
    %v206 = vld [vmem:[#allocation2 + $0x40] sm:$0xff]
    %v207 = vld [vmem:[#allocation2 + $0x48] sm:$0xff]
    %v208 = vld [vmem:[#allocation2 + $0x50] sm:$0xff]
    %v209 = vld [vmem:[#allocation2 + $0x58] sm:$0xff]
    %v210 = vld [vmem:[#allocation2 + $0x60] sm:$0xff]
    %v211 = vld [vmem:[#allocation2 + $0x68] sm:$0xff]
    %v212 = vld [vmem:[#allocation2 + $0x70] sm:$0xff]
    %v213 = vld [vmem:[#allocation2 + $0x78] sm:$0xff]
    %v214 = vld [vmem:[#allocation2 + $0x80] sm:$0xff]
    %v215 = vld [vmem:[#allocation2 + $0x88] sm:$0xff]
    %v216 = vld [vmem:[#allocation2 + $0x90] sm:$0xff]
    %v217 = vld [vmem:[#allocation2 + $0x98] sm:$0xff]
    %v218 = vld [vmem:[#allocation2 + $0xa0] sm:$0xff]
    %v219 = vld [vmem:[#allocation2 + $0xa8] sm:$0xff]
    %220 = vmatprep.subr.mxu0 0.0
    %221 = vmatpush1.msra.mxu0 %v204
    %222 = vmatprep.subr.mxu0 0.0
    %223 = vmatpush1.msra.mxu0 %v205
    %224 = vmatprep.subr.mxu0 0.0
    %225 = vmatpush1.msra.mxu0 %v206
    %226 = vmatprep.subr.mxu0 0.0
    %227 = vmatpush1.msra.mxu0 %v207
    %228 = vmatprep.subr.mxu0 0.0
    %229 = vmatpush1.msra.mxu0 %v208
    %230 = vmatprep.subr.mxu0 0.0
    %231 = vmatpush1.msra.mxu0 %v209
    %232 = vmatprep.subr.mxu0 0.0
    %233 = vmatpush1.msra.mxu0 %v210
    %234 = vmatprep.subr.mxu0 0.0
    %235 = vmatpush1.msra.mxu0 %v211
    %236 = vmatprep.subr.mxu0 0.0
    %237 = vmatpush1.msra.mxu0 %v212
    %238 = vmatprep.subr.mxu0 0.0
    %239 = vmatpush1.msra.mxu0 %v213
    %240 = vmatprep.subr.mxu0 0.0
    %241 = vmatpush1.msra.mxu0 %v214
    %242 = vmatprep.subr.mxu0 0.0
    %243 = vmatpush1.msra.mxu0 %v215
    %244 = vmatprep.subr.mxu0 0.0
    %245 = vmatpush1.msra.mxu0 %v216
    %246 = vmatprep.subr.mxu0 0.0
    %247 = vmatpush1.msra.mxu0 %v217
    %248 = vmatprep.subr.mxu0 0.0
    %249 = vmatpush1.msra.mxu0 %v218
    %250 = vmatprep.subr.mxu0 0.0
    %251 = vmatpush1.msra.mxu0 %v219
    %252 = vmatprep.subr.mxu0 0.0
    %253 = vmatpush1.msra.mxu0 0.0
    %254 = vmatprep.subr.mxu0 0.0
    %255 = vmatpush1.msra.mxu0 0.0
    %256 = vmatprep.subr.mxu0 0.0
    %257 = vmatpush1.msra.mxu0 0.0
    %258 = vmatprep.subr.mxu0 0.0
    %259 = vmatpush1.msra.mxu0 0.0
    %260 = vmatprep.subr.mxu0 0.0
    %261 = vmatpush1.msra.mxu0 0.0
    %262 = vmatprep.subr.mxu0 0.0
    %263 = vmatpush1.msra.mxu0 0.0
    %264 = vmatprep.subr.mxu0 0.0
    %265 = vmatpush1.msra.mxu0 0.0
    %266 = vmatprep.subr.mxu0 0.0
    %267 = vmatpush1.msra.mxu0 0.0
    %268 = vmatprep.subr.mxu0 0.0
    %269 = vmatpush1.msra.mxu0 0.0
    %270 = vmatprep.subr.mxu0 0.0
    %271 = vmatpush1.msra.mxu0 0.0
    %272 = vmatprep.subr.mxu0 0.0
    %273 = vmatpush1.msra.mxu0 0.0
    %274 = vmatprep.subr.mxu0 0.0
    %275 = vmatpush1.msra.mxu0 0.0
    %276 = vmatprep.subr.mxu0 0.0
    %277 = vmatpush1.msra.mxu0 0.0
    %278 = vmatprep.subr.mxu0 0.0
    %279 = vmatpush1.msra.mxu0 0.0
    %280 = vmatprep.subr.mxu0 0.0
    %281 = vmatpush1.msra.mxu0 0.0
    %282 = vmatprep.subr.mxu0 0.0
    %283 = vmatpush1.msra.mxu0 0.0
    %284 = vmatprep.mubr.f32.mxu0 0.0
    %285 = vmatmul.mubr.f32.gmra.mrb[0].mxu0 %v203
    %v286 = vpop.f32.mrb[0].mxu0
    %v287 = vadd.f32 0.0, %v286
    %v288 = vpop.f32.mrb[0].mxu0
    %289 = vdwg.mxu0
    %v290 = vxor.u32 %v287, 2147483648
    %v291 = vmul.f32 %v290, 1.442695
    %v292 = vpow.pop %v291
    %v293 = vadd.f32 %v292, 1.0
    %v294 = vrcp.pop %v293
    %v295 = vmul.f32 1.0, %v294
    %v296 = vmax.f32 %v287, 0.0
    %vm297 = vcmp.ne.f32.partialorder %v287, %v287
    %v298 = vadd.f32 %v287, 0.0
    %v299 = vand.u32 2147483647, %v287
    %v300 = vsub.f32 0.0, %v299
    %v301 = vmul.f32 %v300, 1.442695
    %v302 = vpow.pop %v301
    %v303 = vadd.f32 %v302, 1.0
    %v304 = vlog2.pop %v303
    %v305 = vmul.f32 %v304, 0.6931472
    %v306 = vmul.f32 -0.5, %v302
    %v307 = vadd.f32 %v306, 1.0
    %v308 = vmul.f32 %v307, %v302
    %v309 = vand.u32 2147483647, %v302
    %vm310 = vcmp.lt.f32.partialorder %v309, 0.0004427343
    %v311 = vsel %vm310, %v308, %v305
    %v312 = vadd.f32 %v296, %v311
    %v313 = vsel %vm297, %v298, %v312
    %v314 = vadd.f32 %v313, 1.0
    %v315 = vmul.f32 %v39, %v39
    %v316 = vmul.f32 %v40, %v40
    %v317 = vsel %vm123, %v315, 0.0
    %318 = vadd.xlane.f32.xlu0 %v317
    %v319 = vpop.xlane.xlu0 %318
    %v320 = vsel %vm123, %v316, 0.0
    %321 = vadd.xlane.f32.xlu0 %v320
    %v322 = vpop.xlane.xlu0 %321
    %v323 = vrsqrt.pop %v319
    %v324 = vmul.f32 %v319, %v323
    %vm325 = vcmp.eq.f32.partialorder %v319, inf
    %v326 = vsel %vm325, %v319, %v324
    %vm327 = vcmp.eq.f32.partialorder %v319, 0.0
    %v328 = vand.u32 %v319, 2147483648
    %v329 = vsel %vm327, %v328, %v326
    %v330 = vrsqrt.pop %v322
    %v331 = vmul.f32 %v322, %v330
    %vm332 = vcmp.eq.f32.partialorder %v322, inf
    %v333 = vsel %vm332, %v322, %v331
    %vm334 = vcmp.eq.f32.partialorder %v322, 0.0
    %v335 = vand.u32 %v322, 2147483648
    %v336 = vsel %vm334, %v335, %v333
    %v337 = vmul.f32 %v287, %v287
    %339 = vrot.lane.b32.xlu0 %v337, 112
    %v340 = vpop.permute.xlu0 %339
    %vm342 = vcmask 123904
    %v343 = vsel %vm342, %v340, 0.0
    %344 = vadd.xlane.f32.xlu0 %v343
    %v345 = vpop.xlane.xlu0 %344
    %v346 = vrsqrt.pop %v345
    %v347 = vmul.f32 %v345, %v346
    %vm348 = vcmp.eq.f32.partialorder %v345, inf
    %v349 = vsel %vm348, %v345, %v347
    %vm350 = vcmp.eq.f32.partialorder %v345, 0.0
    %v351 = vand.u32 %v345, 2147483648
    %v352 = vsel %vm350, %v351, %v349
    %v355 = vunpack.c.l.s4 1966171168
    %v356 = vunpack.c.0.s8 %v355
    %v357 = vlaneseq
    %v358 = vshrl.u32 %v357, 7
    %v359 = vsub.s32 %v356, %v358
    %v360 = vrot.slane %v287, %v359
    %v361 = vcombine.high %v360, %v360
    %v363 = vunpack.c.l.s4 1966171168
    %v364 = vunpack.c.0.s8 %v363
    %v365 = vlaneseq
    %v366 = vshrl.u32 %v365, 7
    %v367 = vsub.s32 %v364, %v366
    %v368 = vrot.slane %v360, %v367
    %v370 = vunpack.c.l.s4 1966171168
    %v371 = vunpack.c.0.s8 %v370
    %v372 = vlaneseq
    %v373 = vshrl.u32 %v372, 7
    %v374 = vsub.s32 %v371, %v373
    %v375 = vrot.slane %v361, %v374
    %v376 = vlaneseq
    %v377 = vshrl.u32 %v376, 7
    %v378 = vsub.s32 0, %v377
    %v379 = vrot.slane %v368, %v378
    %v380 = vlaneseq
    %v381 = vshrl.u32 %v380, 7
    %v382 = vsub.s32 0, %v381
    %v383 = vrot.slane %v375, %v382
    %384 = vrot.lane.b32.xlu0 %v379, 112
    %v385 = vpop.permute.xlu0 %384
    %386 = vrot.lane.b32.xlu0 %v383, 112
    %v387 = vpop.permute.xlu0 %386
    %v390 = vmul.f32 %v39, %v385
    %v391 = vmul.f32 %v40, %v387
    %v392 = vsel %vm123, %v390, 0.0
    %393 = vadd.xlane.f32.xlu0 %v392
    %v394 = vpop.xlane.xlu0 %393
    %v395 = vsel %vm123, %v391, 0.0
    %396 = vadd.xlane.f32.xlu0 %v395
    %v397 = vpop.xlane.xlu0 %396
    %v399 = vlaneseq
    %v400 = vshrl.u32 %v399, 7
    %v401 = vsub.s32 0, %v400
    %v402 = vrot.slane %v352, %v401
    %v403 = vlaneseq
    %v404 = vshrl.u32 %v403, 7
    %v405 = vsub.s32 1, %v404
    %v406 = vrot.slane %v352, %v405
    %v409 = vmul.f32 %v329, %v402
    %v410 = vmul.f32 %v336, %v406
    %v411 = vadd.f32 %v409, 1e-06
    %v412 = vadd.f32 %v410, 1e-06
    %v413 = vrcp.pop %v411
    %v414 = vmul.f32 %v394, %v413
    %v415 = vrcp.pop %v412
    %v416 = vmul.f32 %v397, %v415
    %418 = vset.pattern.permute.xlu0 96
    %419 = vperm.xlu0 %418, %v314
    %v420 = vpop.permute.xlu0 %419
    %424 = vset.pattern.permute.xlu0 0
    %425 = vperm.xlu0 %424, %v414
    %v426 = vpop.permute.xlu0 %425
    %427 = vset.pattern.permute.xlu0 0
    %428 = vperm.xlu0 %427, %v416
    %v429 = vpop.permute.xlu0 %428
    %v430 = vlaneseq
    %v431 = vand.u32 %v430, 127
    %v432 = vlaneseq
    %v433 = vshrl.u32 %v432, 7
    %v434 = vsub.s32 %v431, %v433
    %v435 = vrot.slane %v426, %v434
    %v436 = vlaneseq
    %v437 = vshrl.u32 %v436, 7
    %v438 = vsub.s32 %v431, %v437
    %v439 = vrot.slane %v429, %v438
    %vm440 = vcmask 1041409
    %v441 = vsel %vm440, %v439, %v435
    %v443 = vmul.f32 %v420, %v441
    %vm444 = vcmask 58368
    %v445 = vsel %vm444, %v443, -inf
    %446 = vmax.xlane.f32.xlu0 %v445
    %v447 = vpop.xlane.xlu0 %446
    %v448 = vsub.f32 %v443, %v447
    %v449 = vmul.f32 %v448, 1.442695
    %v450 = vpow.pop %v449
    %v451 = vsel %vm444, %v450, 0.0
    %452 = vadd.xlane.f32.xlu0 %v451
    %v453 = vpop.xlane.xlu0 %452
    %v454 = vrcp.pop %v453
    %v455 = vmul.f32 %v450, %v454
    %457 = vset.pattern.permute.xlu0 97
    %458 = vperm.xlu0 %457, %v295
    %v459 = vpop.permute.xlu0 %458
    %v461 = vmul.f32 %v459, %v455
    %v462 = vlaneseq
    %v463 = vshrl.u32 %v462, 7
    %v464 = vsub.s32 0, %v463
    %v465 = vrot.slane %v461, %v464
    %467 = vbcast.lane.b32.xlu0 %v465, 256
    %v468 = vpop.permute.xlu0 %467
    %v469 = vlaneseq
    %v470 = vshrl.u32 %v469, 7
    %v471 = vsub.s32 1, %v470
    %v472 = vrot.slane %v461, %v471
    %474 = vbcast.lane.b32.xlu0 %v472, 256
    %v475 = vpop.permute.xlu0 %474
    %v477 = vunpack.c.l.s4 1966171168
    %v478 = vunpack.c.0.s8 %v477
    %v479 = vlaneseq
    %v480 = vshrl.u32 %v479, 7
    %v481 = vsub.s32 %v478, %v480
    %v482 = vrot.slane %v295, %v481
    %v483 = vcombine.high %v482, %v482
    %v485 = vunpack.c.l.s4 1966171168
    %v486 = vunpack.c.0.s8 %v485
    %v487 = vlaneseq
    %v488 = vshrl.u32 %v487, 7
    %v489 = vsub.s32 %v486, %v488
    %v490 = vrot.slane %v482, %v489
    %v492 = vunpack.c.l.s4 1966171168
    %v493 = vunpack.c.0.s8 %v492
    %v494 = vlaneseq
    %v495 = vshrl.u32 %v494, 7
    %v496 = vsub.s32 %v493, %v495
    %v497 = vrot.slane %v483, %v496
    %v498 = vlaneseq
    %v499 = vshrl.u32 %v498, 7
    %v500 = vsub.s32 0, %v499
    %v501 = vrot.slane %v490, %v500
    %v502 = vlaneseq
    %v503 = vshrl.u32 %v502, 7
    %v504 = vsub.s32 0, %v503
    %v505 = vrot.slane %v497, %v504
    %v508 = vmul.f32 %v468, %v501
    %v509 = vmul.f32 %v475, %v505
    %v510 = vsub.f32 1.0, %v508
    %v511 = vsub.f32 1.0, %v509
    %514 = vrot.lane.b32.xlu0 %v510, 96
    %v515 = vpop.permute.xlu0 %514
    %516 = vrot.lane.b32.xlu0 %v511, 96
    %v517 = vpop.permute.xlu0 %516
    %v520 = vmul.f32 %v39, %v515
    %v521 = vmul.f32 %v40, %v517
    %v524 = vmul.f32 %v468, %v379
    %v525 = vmul.f32 %v475, %v383
    %528 = vrot.lane.b32.xlu0 %v524, 80
    %v529 = vpop.permute.xlu0 %528
    %530 = vrot.lane.b32.xlu0 %v525, 80
    %v531 = vpop.permute.xlu0 %530
    %v534 = vadd.f32 %v520, %v529
    %v535 = vadd.f32 %v521, %v531
    %536 = vst.msk [vmem:[%s5] sm:$0xff] %vm123, %v534
    %537 = vst.msk [vmem:[%s5 + $0x8] sm:$0xff] %vm123, %v535
    %v538 = vlaneseq
    %v539 = vshrl.u32 %v538, 7
    %vm540 = vcmp.ne.s32.totalorder %v539, %v431
    %v541 = vsel %vm540, 1, 0
    %v542 = vcvt.s32.f32 %v541
    %v545 = vunpack.c.l.s4 1966171168
    %v546 = vunpack.c.0.s8 %v545
    %v547 = vlaneseq
    %v548 = vshrl.u32 %v547, 7
    %v549 = vsub.s32 %v546, %v548
    %v550 = vrot.slane %v461, %v549
    %v551 = vcombine.high %v550, %v550
    %v553 = vunpack.c.l.s4 1966171168
    %v554 = vunpack.c.0.s8 %v553
    %v555 = vlaneseq
    %v556 = vshrl.u32 %v555, 7
    %v557 = vsub.s32 %v554, %v556
    %v558 = vrot.slane %v550, %v557
    %v560 = vunpack.c.l.s4 1966171168
    %v561 = vunpack.c.0.s8 %v560
    %v562 = vlaneseq
    %v563 = vshrl.u32 %v562, 7
    %v564 = vsub.s32 %v561, %v563
    %v565 = vrot.slane %v551, %v564
    %v566 = vsub.f32 1.0, %v468
    %v567 = vsub.f32 1.0, %v475
    %v568 = vlaneseq
    %v569 = vshrl.u32 %v568, 7
    %v570 = vsub.s32 0, %v569
    %v571 = vrot.slane %v558, %v570
    %v572 = vlaneseq
    %v573 = vshrl.u32 %v572, 7
    %v574 = vsub.s32 0, %v573
    %v575 = vrot.slane %v565, %v574
    %v578 = vsub.f32 %v566, %v571
    %v579 = vsub.f32 %v567, %v575
    %v580 = vmul.f32 %v578, %v41
    %v581 = vmul.f32 %v579, %v42
    %v582 = vmul.f32 %v468, %v571
    %v583 = vmul.f32 %v475, %v575
    %v584 = vadd.f32 %v580, %v582
    %v585 = vadd.f32 %v581, %v583
    %v586 = vmul.f32 %v584, %v542
    %v587 = vmul.f32 %v585, %v542
    %vm588 = vcmask 64512
    %589 = vst.msk [vmem:[%s6] sm:$0xff] %vm588, %v586
    %590 = vst.msk [vmem:[%s6 + $0x8] sm:$0xff] %vm588, %v587
    %vm591 = vcmp.lt.s32.totalorder %v431, 16
    %v592 = vsel %vm591, 1, 0
    %v593 = vcvt.s32.f32 %v592
    %v594 = vmul.f32 %v287, %v593
    %v595 = vld [vmem:[#allocation2 + $0xd8] sm:$0x1]
    %v596 = vlaneseq
    %v597 = vshrl.u32 %v596, 7
    %v598 = vsub.s32 0, %v597
    %v599 = vrot.slane %v595, %v598
    %v600 = vadd.f32 %v594, %v599
    %v601 = vmul.f32 %v534, %v534
    %v602 = vmul.f32 %v535, %v535
    %v603 = vsel %vm123, %v601, 0.0
    %604 = vadd.xlane.f32.xlu0 %v603
    %v605 = vpop.xlane.xlu0 %604
    %v606 = vsel %vm123, %v602, 0.0
    %607 = vadd.xlane.f32.xlu0 %v606
    %v608 = vpop.xlane.xlu0 %607
    %v609 = vrsqrt.pop %v605
    %v610 = vmul.f32 %v605, %v609
    %vm611 = vcmp.eq.f32.partialorder %v605, inf
    %v612 = vsel %vm611, %v605, %v610
    %vm613 = vcmp.eq.f32.partialorder %v605, 0.0
    %v614 = vand.u32 %v605, 2147483648
    %v615 = vsel %vm613, %v614, %v612
    %v616 = vrsqrt.pop %v608
    %v617 = vmul.f32 %v608, %v616
    %vm618 = vcmp.eq.f32.partialorder %v608, inf
    %v619 = vsel %vm618, %v608, %v617
    %vm620 = vcmp.eq.f32.partialorder %v608, 0.0
    %v621 = vand.u32 %v608, 2147483648
    %v622 = vsel %vm620, %v621, %v619
    %623 = vrot.lane.b32.xlu0 %v337, 64
    %v624 = vpop.permute.xlu0 %623
    %v626 = vsel %vm342, %v624, 0.0
    %627 = vadd.xlane.f32.xlu0 %v626
    %v628 = vpop.xlane.xlu0 %627
    %v629 = vrsqrt.pop %v628
    %v630 = vmul.f32 %v628, %v629
    %vm631 = vcmp.eq.f32.partialorder %v628, inf
    %v632 = vsel %vm631, %v628, %v630
    %vm633 = vcmp.eq.f32.partialorder %v628, 0.0
    %v634 = vand.u32 %v628, 2147483648
    %v635 = vsel %vm633, %v634, %v632
    %636 = vrot.lane.b32.xlu0 %v379, 64
    %v637 = vpop.permute.xlu0 %636
    %638 = vrot.lane.b32.xlu0 %v383, 64
    %v639 = vpop.permute.xlu0 %638
    %v642 = vmul.f32 %v534, %v637
    %v643 = vmul.f32 %v535, %v639
    %v644 = vsel %vm123, %v642, 0.0
    %645 = vadd.xlane.f32.xlu0 %v644
    %v646 = vpop.xlane.xlu0 %645
    %v647 = vsel %vm123, %v643, 0.0
    %648 = vadd.xlane.f32.xlu0 %v647
    %v649 = vpop.xlane.xlu0 %648
    %v651 = vlaneseq
    %v652 = vshrl.u32 %v651, 7
    %v653 = vsub.s32 0, %v652
    %v654 = vrot.slane %v635, %v653
    %v655 = vlaneseq
    %v656 = vshrl.u32 %v655, 7
    %v657 = vsub.s32 1, %v656
    %v658 = vrot.slane %v635, %v657
    %v661 = vmul.f32 %v615, %v654
    %v662 = vmul.f32 %v622, %v658
    %v663 = vadd.f32 %v661, 1e-06
    %v664 = vadd.f32 %v662, 1e-06
    %v665 = vrcp.pop %v663
    %v666 = vmul.f32 %v646, %v665
    %v667 = vrcp.pop %v664
    %v668 = vmul.f32 %v649, %v667
    %669 = vset.pattern.permute.xlu0 98
    %670 = vperm.xlu0 %669, %v314
    %v671 = vpop.permute.xlu0 %670
    %675 = vset.pattern.permute.xlu0 0
    %676 = vperm.xlu0 %675, %v666
    %v677 = vpop.permute.xlu0 %676
    %678 = vset.pattern.permute.xlu0 0
    %679 = vperm.xlu0 %678, %v668
    %v680 = vpop.permute.xlu0 %679
    %v681 = vlaneseq
    %v682 = vshrl.u32 %v681, 7
    %v683 = vsub.s32 %v431, %v682
    %v684 = vrot.slane %v677, %v683
    %v685 = vlaneseq
    %v686 = vshrl.u32 %v685, 7
    %v687 = vsub.s32 %v431, %v686
    %v688 = vrot.slane %v680, %v687
    %v689 = vsel %vm440, %v688, %v684
    %v691 = vmul.f32 %v671, %v689
    %v692 = vsel %vm444, %v691, -inf
    %693 = vmax.xlane.f32.xlu0 %v692
    %v694 = vpop.xlane.xlu0 %693
    %v695 = vsub.f32 %v691, %v694
    %v696 = vmul.f32 %v695, 1.442695
    %v697 = vpow.pop %v696
    %v698 = vsel %vm444, %v697, 0.0
    %699 = vadd.xlane.f32.xlu0 %v698
    %v700 = vpop.xlane.xlu0 %699
    %v701 = vrcp.pop %v700
    %v702 = vmul.f32 %v697, %v701
    %v703 = vlaneseq
    %v704 = vshrl.u32 %v703, 7
    %v705 = vsub.s32 0, %v704
    %v706 = vrot.slane %v702, %v705
    %708 = vbcast.lane.b32.xlu0 %v706, 256
    %v709 = vpop.permute.xlu0 %708
    %v710 = vlaneseq
    %v711 = vshrl.u32 %v710, 7
    %v712 = vsub.s32 1, %v711
    %v713 = vrot.slane %v702, %v712
    %715 = vbcast.lane.b32.xlu0 %v713, 256
    %v716 = vpop.permute.xlu0 %715
    %v717 = vmul.f32 %v709, %v534
    %v718 = vmul.f32 %v716, %v535
    %v719 = vsel %vm123, %v717, 0.0
    %v720 = vrot.slane %v719, 4
    %v721 = vadd.f32 %v719, %v720
    %v722 = vrot.slane %v721, 2
    %v723 = vadd.f32 %v721, %v722
    %v724 = vrot.slane %v723, 1
    %v725 = vadd.f32 %v723, %v724
    %v726 = vsel %vm123, %v718, 0.0
    %v727 = vrot.slane %v726, 4
    %v728 = vadd.f32 %v726, %v727
    %v729 = vrot.slane %v728, 2
    %v730 = vadd.f32 %v728, %v729
    %v731 = vrot.slane %v730, 1
    %v732 = vadd.f32 %v730, %v731
    %v733 = vld [vmem:[#allocation2 + $0xb0] sm:$0xff]
    %v734 = vld [vmem:[#allocation2 + $0xb8] sm:$0xff]
    %736 = vbcast.lane.b32.xlu0 %v725, 256
    %v737 = vpop.permute.xlu0 %736
    %s739 = sor.u32 256, 8
    %740 = vbcast.lane.b32.xlu0 %v725, %s739
    %v741 = vpop.permute.xlu0 %740
    %743 = vbcast.lane.b32.xlu0 %v732, 256
    %v744 = vpop.permute.xlu0 %743
    %s746 = sor.u32 256, 8
    %747 = vbcast.lane.b32.xlu0 %v732, %s746
    %v748 = vpop.permute.xlu0 %747
    %v749 = vmul.f32 %v737, %v733
    %v750 = vmul.f32 %v741, %v734
    %v751 = vmul.f32 %v744, %v733
    %v752 = vmul.f32 %v748, %v734
    %v753 = vadd.f32 %v749, %v750
    %v754 = vrot.slane %v753, 4
    %v755 = vadd.f32 %v753, %v754
    %v756 = vrot.slane %v755, 2
    %v757 = vadd.f32 %v755, %v756
    %v758 = vrot.slane %v757, 1
    %v759 = vadd.f32 %v757, %v758
    %v760 = vadd.f32 %v751, %v752
    %v761 = vrot.slane %v760, 4
    %v762 = vadd.f32 %v760, %v761
    %v763 = vrot.slane %v762, 2
    %v764 = vadd.f32 %v762, %v763
    %v765 = vrot.slane %v764, 1
    %v766 = vadd.f32 %v764, %v765
    %v769 = vsel %vm440, %v766, %v759
    %v771 = vadd.f32 %v600, %v769
    %772 = vrot.lane.b32.xlu0 %v337, 48
    %v773 = vpop.permute.xlu0 %772
    %v775 = vsel %vm342, %v773, 0.0
    %776 = vadd.xlane.f32.xlu0 %v775
    %v777 = vpop.xlane.xlu0 %776
    %v778 = vrsqrt.pop %v777
    %v779 = vmul.f32 %v777, %v778
    %vm780 = vcmp.eq.f32.partialorder %v777, inf
    %v781 = vsel %vm780, %v777, %v779
    %vm782 = vcmp.eq.f32.partialorder %v777, 0.0
    %v783 = vand.u32 %v777, 2147483648
    %v784 = vsel %vm782, %v783, %v781
    %785 = vrot.lane.b32.xlu0 %v379, 48
    %v786 = vpop.permute.xlu0 %785
    %787 = vrot.lane.b32.xlu0 %v383, 48
    %v788 = vpop.permute.xlu0 %787
    %v791 = vmul.f32 %v534, %v786
    %v792 = vmul.f32 %v535, %v788
    %v793 = vsel %vm123, %v791, 0.0
    %794 = vadd.xlane.f32.xlu0 %v793
    %v795 = vpop.xlane.xlu0 %794
    %v796 = vsel %vm123, %v792, 0.0
    %797 = vadd.xlane.f32.xlu0 %v796
    %v798 = vpop.xlane.xlu0 %797
    %v800 = vlaneseq
    %v801 = vshrl.u32 %v800, 7
    %v802 = vsub.s32 0, %v801
    %v803 = vrot.slane %v784, %v802
    %v804 = vlaneseq
    %v805 = vshrl.u32 %v804, 7
    %v806 = vsub.s32 1, %v805
    %v807 = vrot.slane %v784, %v806
    %v810 = vmul.f32 %v615, %v803
    %v811 = vmul.f32 %v622, %v807
    %v812 = vadd.f32 %v810, 1e-06
    %v813 = vadd.f32 %v811, 1e-06
    %v814 = vrcp.pop %v812
    %v815 = vmul.f32 %v795, %v814
    %v816 = vrcp.pop %v813
    %v817 = vmul.f32 %v798, %v816
    %818 = vset.pattern.permute.xlu0 99
    %819 = vperm.xlu0 %818, %v314
    %v820 = vpop.permute.xlu0 %819
    %824 = vset.pattern.permute.xlu0 0
    %825 = vperm.xlu0 %824, %v815
    %v826 = vpop.permute.xlu0 %825
    %827 = vset.pattern.permute.xlu0 0
    %828 = vperm.xlu0 %827, %v817
    %v829 = vpop.permute.xlu0 %828
    %v830 = vlaneseq
    %v831 = vshrl.u32 %v830, 7
    %v832 = vsub.s32 %v431, %v831
    %v833 = vrot.slane %v826, %v832
    %v834 = vlaneseq
    %v835 = vshrl.u32 %v834, 7
    %v836 = vsub.s32 %v431, %v835
    %v837 = vrot.slane %v829, %v836
    %v838 = vsel %vm440, %v837, %v833
    %v840 = vmul.f32 %v820, %v838
    %v841 = vsel %vm444, %v840, -inf
    %842 = vmax.xlane.f32.xlu0 %v841
    %v843 = vpop.xlane.xlu0 %842
    %v844 = vsub.f32 %v840, %v843
    %v845 = vmul.f32 %v844, 1.442695
    %v846 = vpow.pop %v845
    %v847 = vsel %vm444, %v846, 0.0
    %848 = vadd.xlane.f32.xlu0 %v847
    %v849 = vpop.xlane.xlu0 %848
    %v850 = vrcp.pop %v849
    %v851 = vmul.f32 %v846, %v850
    %v852 = vlaneseq
    %v853 = vshrl.u32 %v852, 7
    %v854 = vsub.s32 0, %v853
    %v855 = vrot.slane %v851, %v854
    %857 = vbcast.lane.b32.xlu0 %v855, 256
    %v858 = vpop.permute.xlu0 %857
    %v859 = vlaneseq
    %v860 = vshrl.u32 %v859, 7
    %v861 = vsub.s32 1, %v860
    %v862 = vrot.slane %v851, %v861
    %864 = vbcast.lane.b32.xlu0 %v862, 256
    %v865 = vpop.permute.xlu0 %864
    %v866 = vmul.f32 %v858, %v534
    %v867 = vmul.f32 %v865, %v535
    %v868 = vsel %vm123, %v866, 0.0
    %v869 = vrot.slane %v868, 4
    %v870 = vadd.f32 %v868, %v869
    %v871 = vrot.slane %v870, 2
    %v872 = vadd.f32 %v870, %v871
    %v873 = vrot.slane %v872, 1
    %v874 = vadd.f32 %v872, %v873
    %v875 = vsel %vm123, %v867, 0.0
    %v876 = vrot.slane %v875, 4
    %v877 = vadd.f32 %v875, %v876
    %v878 = vrot.slane %v877, 2
    %v879 = vadd.f32 %v877, %v878
    %v880 = vrot.slane %v879, 1
    %v881 = vadd.f32 %v879, %v880
    %v882 = vld [vmem:[#allocation2 + $0xc0] sm:$0xff]
    %v883 = vld [vmem:[#allocation2 + $0xc8] sm:$0xff]
    %885 = vbcast.lane.b32.xlu0 %v874, 256
    %v886 = vpop.permute.xlu0 %885
    %s888 = sor.u32 256, 8
    %889 = vbcast.lane.b32.xlu0 %v874, %s888
    %v890 = vpop.permute.xlu0 %889
    %892 = vbcast.lane.b32.xlu0 %v881, 256
    %v893 = vpop.permute.xlu0 %892
    %s895 = sor.u32 256, 8
    %896 = vbcast.lane.b32.xlu0 %v881, %s895
    %v897 = vpop.permute.xlu0 %896
    %v898 = vmul.f32 %v886, %v882
    %v899 = vmul.f32 %v890, %v883
    %v900 = vmul.f32 %v893, %v882
    %v901 = vmul.f32 %v897, %v883
    %v902 = vadd.f32 %v898, %v899
    %v903 = vrot.slane %v902, 4
    %v904 = vadd.f32 %v902, %v903
    %v905 = vrot.slane %v904, 2
    %v906 = vadd.f32 %v904, %v905
    %v907 = vrot.slane %v906, 1
    %v908 = vadd.f32 %v906, %v907
    %v909 = vadd.f32 %v900, %v901
    %v910 = vrot.slane %v909, 4
    %v911 = vadd.f32 %v909, %v910
    %v912 = vrot.slane %v911, 2
    %v913 = vadd.f32 %v911, %v912
    %v914 = vrot.slane %v913, 1
    %v915 = vadd.f32 %v913, %v914
    %v918 = vsel %vm440, %v915, %v908
    %v920 = vadd.f32 %v771, %v918
    %921 = vst [vmem:[%s7] sm:$0x3] %v920
    // Predicated region
    $region26: #{_forward.1} parent=1 // pred_check
      _
    $region27: #{_forward.1} parent=1 // pred_check_branch
      %923 = sbr.rel (0) target = $region29
    $region28: #{_forward.1} parent=1 // pred_region
      _
    $region29: #{_forward.1} parent=1 // pred_fallthru
      _
    // Predicated region
    $region30: #{_forward.1} parent=1 // pred_check
      _
    $region31: #{_forward.1} parent=1 // pred_check_branch
      %925 = sbr.rel (0) target = $region33
    $region32: #{_forward.1} parent=1 // pred_region
      _
    $region33: #{_forward.1} parent=1 // pred_fallthru
      _
    // Predicated region
    $region34: #{_forward.1} parent=1 // pred_check
      _
    $region35: #{_forward.1} parent=1 // pred_check_branch
      %927 = sbr.rel (0) target = $region37
    $region36: #{_forward.1} parent=1 // pred_region
      _
    $region37: #{_forward.1} parent=1 // pred_fallthru
      _
    // Predicated region
    $region38: #{_forward.1} parent=1 // pred_check
      _
    $region39: #{_forward.1} parent=1 // pred_check_branch
      %929 = sbr.rel (0) target = $region41
    $region40: #{_forward.1} parent=1 // pred_region
      _
    $region41: #{_forward.1} parent=1 // pred_fallthru
      _
    // Predicated region
    $region42: #{_forward.1} parent=1 // pred_check
      _
    $region43: #{_forward.1} parent=1 // pred_check_branch
      %931 = sbr.rel (0) target = $region45
    $region44: #{_forward.1} parent=1 // pred_region
      _
    $region45: #{_forward.1} parent=1 // pred_fallthru
      _
    // Predicated region
    $region46: #{_forward.1} parent=1 // pred_check
      _
    $region47: #{_forward.1} parent=1 // pred_check_branch
      %933 = sbr.rel (0) target = $region49
    $region48: #{_forward.1} parent=1 // pred_region
      _
    $region49: #{_forward.1} parent=1 // pred_fallthru
      _
    %934 = vsyncpa [#allocation3], 1

</llo_original>
